<compile_context>
chip_gen: v7x
topology: tpu7x:2x2x1
jax: 0.10.0
libtpu: 0.0.40
codegen_flags: <defaults>
</compile_context>

<pallas_src>
import functools

import jax
import jax.numpy as jnp
import numpy as np
from jax.experimental import pallas as pl
from jax.experimental.pallas import tpu as pltpu

_VMEM_LIMIT_BYTES = 48 * 1024 * 1024   # explicit: > scoped defaults, < v7x physical
_TARGET_STEP_BYTES = 8 * 1024 * 1024   # in+out bytes per grid step (x2 buffers = 16 MiB)


def _copy_cast_kernel(x_ref, o_ref):
    # Pure HBM-bound streaming copy (plus optional cast); the body stays a
    # single lane-dense load/store so DMA is the only cost.
    o_ref[...] = x_ref[...].astype(o_ref.dtype)


def _sublane_multiple(dtype) -> int:
    """Native second-minor tiling multiple: 8 for 4B, 16 for 2B, 32 for 1B."""
    itemsize = jnp.dtype(dtype).itemsize
    return max(8, 32 // max(itemsize, 1))


def _pick_lanes(n: int):
    """Widest lane count (multiple of 128) that divides the flat length."""
    for lanes in (2048, 1024, 512, 256, 128):
        if n % lanes == 0:
            return lanes
    return None  # ragged tail -> handled by the pure-XLA path (no padding copy)


def _pick_tile_rows(rows: int, bytes_per_row: int, sublane: int) -> int:
    """~8 MiB (in+out) per step, dtype-native sublane multiple, grid >= 2."""
    target = max(sublane, _TARGET_STEP_BYTES // max(bytes_per_row, 1))
    target = (target // sublane) * sublane
    if rows > target:
        return target
    # Array fits in one block: split into >= 2 steps (when splittable on a
    # sublane boundary) so both v7x TensorCores issue DMAs.
    if rows >= 2 * sublane:
        half = -(-((rows + 1) // 2) // sublane) * sublane
        return min(half, rows)
    return rows  # tiny array; single full-rows block (exempt from 8-row rule)


def _pallas_real_plane(x2d: jax.Array, out_dtype) -> jax.Array:
    rows, lanes = x2d.shape
    in_bpe = jnp.dtype(x2d.dtype).itemsize
    out_bpe = jnp.dtype(out_dtype).itemsize
    sublane = max(_sublane_multiple(x2d.dtype), _sublane_multiple(out_dtype))
    tile_r = _pick_tile_rows(rows, lanes * (in_bpe + out_bpe), sublane)
    grid = (pl.cdiv(rows, tile_r),)

    return pl.pallas_call(
        _copy_cast_kernel,
        out_shape=jax.ShapeDtypeStruct((rows, lanes), out_dtype),
        grid=grid,
        in_specs=[pl.BlockSpec((tile_r, lanes), lambda i: (i, 0))],
        out_specs=pl.BlockSpec((tile_r, lanes), lambda i: (i, 0)),
        compiler_params=pltpu.CompilerParams(
            dimension_semantics=("parallel",),
            vmem_limit_bytes=_VMEM_LIMIT_BYTES,
        ),
        cost_estimate=pl.CostEstimate(
            flops=0,
            transcendentals=0,
            bytes_accessed=rows * lanes * (in_bpe + out_bpe),
        ),
    )(x2d)


@functools.partial(jax.jit, static_argnames=("use_pallas",))
def incoherent_int2complex(input_field: jax.Array, use_pallas: bool = True) -> jax.Array:
    """JAX/Pallas equivalent of Incoherent_Int2Complex.forward.

    Must run under jit (it is decorated) so the zero imaginary plane and the
    upcast/complex construction fuse and never materialize in HBM.

    Args:
        input_field: real array (e.g. NCHW [B, C, H, W]); any real dtype.
        use_pallas: if False (or for ragged sizes), use the pure-XLA path,
            which for f32 inputs is already at the 12 B/elem HBM floor.

    Returns:
        complex64 array of the same shape with zero imaginary part.
    """
    orig_shape = input_field.shape
    n = int(np.prod(orig_shape)) if len(orig_shape) > 0 else 1

    if n == 0:  # empty field: nothing to stream
        return jnp.zeros(orig_shape, jnp.complex64)

    # Keep the intermediate real plane in the input dtype when it is a narrow
    # float (bf16/f16): XLA fuses the upcast into lax.complex.  Everything
    # else (ints, bool, f64-with-x32) goes through f32.
    in_dtype = jnp.dtype(input_field.dtype)
    if jnp.issubdtype(in_dtype, jnp.floating) and in_dtype.itemsize <= 4:
        plane_dtype = in_dtype
    else:
        plane_dtype = jnp.float32

    x_flat = input_field.reshape(-1)
    lanes = _pick_lanes(n)

    if use_pallas and lanes is not None:
        x2d = x_flat.reshape(n // lanes, lanes)
        real = _pallas_real_plane(x2d, plane_dtype).reshape(orig_shape)
    else:
        # Ragged numel or explicit bypass: no padding copy, no extra pass.
        real = input_field.astype(plane_dtype)

    real_f32 = real.astype(jnp.float32)
    # Fused zero broadcast + complex construction (no HBM traffic for imag).
    return jax.lax.complex(real_f32, jnp.zeros_like(real_f32))


if __name__ == "__main__":
    key = jax.random.PRNGKey(0)
    # Small NCHW "input field" consistent with the PyTorch module.
    x = jax.random.normal(key, (2, 4, 16, 16), dtype=jnp.float32)

    out = incoherent_int2complex(x)
    out = jax.block_until_ready(out)

    # Sanity checks vs. reference semantics: complex64, real == x, imag == 0.
    assert out.shape == x.shape
    assert out.dtype == jnp.complex64
    assert jnp.allclose(jnp.real(out), x)
    assert jnp.allclose(jnp.imag(out), jnp.zeros_like(x))

    print("KERNEL_OK")
</pallas_src>

<mosaic_0001>
module attributes {stable_mosaic.version = 11 : i64} {
  func.func @_copy_cast_kernel(%arg0: i32, %arg1: memref<1x2048xf32, #tpu.memory_space<vmem>>, %arg2: memref<1x2048xf32, #tpu.memory_space<vmem>>) attributes {dimension_semantics = [#tpu.dimension_semantics<parallel>], iteration_bounds = array<i64: 1>, scalar_prefetch = 0 : i64, scratch_operands = 0 : i64, tpu.core_type = #tpu.core_type<tc>, window_params = [{transform_indices = @transform_0, window_bounds = array<i64: 1, 2048>}, {transform_indices = @transform_1, window_bounds = array<i64: 1, 2048>}]} {
    %c0 = arith.constant 0 : index
    %c0_0 = arith.constant 0 : index
    %0 = vector.load %arg1[%c0, %c0_0] : memref<1x2048xf32, #tpu.memory_space<vmem>>, vector<1x2048xf32>
    %c0_1 = arith.constant 0 : index
    %c0_2 = arith.constant 0 : index
    %1 = vector.load %arg2[%c0_1, %c0_2] : memref<1x2048xf32, #tpu.memory_space<vmem>>, vector<1x2048xf32>
    tpu.vector_store %arg2[%c0_1, %c0_2], %0 {strides = array<i32>} : memref<1x2048xf32, #tpu.memory_space<vmem>>, vector<1x2048xf32>,
    return
  }
  func.func @transform_0(%arg0: i32) -> (i32, i32) {
    %c0_i32 = arith.constant 0 : i32
    %c0_i32_0 = arith.constant 0 : i32
    return %arg0, %c0_i32 : i32, i32
  }
  func.func @transform_1(%arg0: i32) -> (i32, i32) {
    %c0_i32 = arith.constant 0 : i32
    %c0_i32_0 = arith.constant 0 : i32
    return %arg0, %c0_i32 : i32, i32
  }
}

</mosaic_0001>

<llo_original>
// kernel: custom-call
$region0: #{custom-call}
  %s0 = inlined_call_operand.vmem [shape: f32[2,4,16,16], index: 0, kind: input, shape index: {}]
  %s1 = inlined_call_operand.vmem [shape: f32[2,4,16,16], index: 1, kind: input, shape index: {}]
  %s2 = inlined_call_operand.hbm [shape: c64[2,4,16,16], index: 2, kind: output, shape index: {}]
  %s3 = scalar_lea.hbm %s2, 2048
  $region1: #{custom-call} parent=0
    #allocation0 [shape = 's32[1]{0}', space=sflag, size = 0x4, scoped, tag = 'scoped memory for custom-call']
    %4 = vsyncpa [#allocation0], 0
    %s5 = sshll.u32 %s0, 4
    %s6 = int_to_ptr.vmem [resolvable:$true] %s5
    %8 = dma.vmem_to_hbm [thread:$0]  %s6, 2048, %s2, [#allocation0]
    %9 = dma.done [#allocation0], 2048
    %10 = vsyncpa [#allocation0], 1
  $region2: #{custom-call} parent=0
    #allocation1 [shape = 's32[1]{0}', space=sflag, size = 0x4, scoped, tag = 'scoped memory for custom-call']
    %11 = vsyncpa [#allocation1], 0
    %s12 = sshll.u32 %s1, 4
    %s13 = int_to_ptr.vmem [resolvable:$true] %s12
    %15 = dma.vmem_to_hbm [thread:$0]  %s13, 2048, %s3, [#allocation1]
    %16 = dma.done [#allocation1], 2048
    %17 = vsyncpa [#allocation1], 1

// kernel: incoherent_int2complex.1
$region0: #{incoherent_int2complex.1}
  #allocation0 [shape = 'u32[]', space=smem, size = 0x4, offset = 0x4, fixed_abs, tag = 'smem constant byte address 0x4 - core index']
  #allocation1 [shape = 'u32[144,128]{1,0:T(1,128)}', space=vmem, size = 0x12000, scoped, tag = 'internal scratch']
  %s0 = inlined_call_operand.vmem [shape: f32[1,2048], index: 0, kind: input, shape index: {}]
  %s1 = inlined_call_operand.vmem [shape: f32[1,2048], index: 1, kind: output, shape index: {}]
  %s2 = sld [smem:[#allocation0]]
  $region14: #{incoherent_int2complex.1} parent=0
    _
  %s4 = ssub.s32 1, %s2
  %s5 = scalar_select 0, %s4, %s2
  // Predicated region
  $region2: #{incoherent_int2complex.1} parent=0 // pred_check
    _
  $region3: #{incoherent_int2complex.1} parent=0 // pred_check_branch
    %7 = sbr.rel (0) target = $region5
  $region4: #{incoherent_int2complex.1} parent=0 // pred_region
    _
  $region5: #{incoherent_int2complex.1} parent=0 // pred_fallthru
    _
  %v8 = vld [vmem:[%s0] sm:$0xff]
  %v9 = vld [vmem:[%s0 + $0x8] sm:$0xff]
  %10 = vst [vmem:[%s1] sm:$0xff] %v8
  %11 = vst [vmem:[%s1 + $0x8] sm:$0xff] %v9
  // Predicated region
  $region6: #{incoherent_int2complex.1} parent=0 // pred_check
    _
  $region7: #{incoherent_int2complex.1} parent=0 // pred_check_branch
    %13 = sbr.rel (0) target = $region9
  $region8: #{incoherent_int2complex.1} parent=0 // pred_region
    _
  $region9: #{incoherent_int2complex.1} parent=0 // pred_fallthru
    _
  // Predicated region
  $region10: #{incoherent_int2complex.1} parent=0 // pred_check
    _
  $region11: #{incoherent_int2complex.1} parent=0 // pred_check_branch
    %15 = sbr.rel (0) target = $region13
  $region12: #{incoherent_int2complex.1} parent=0 // pred_region
    _
  $region13: #{incoherent_int2complex.1} parent=0 // pred_fallthru
    _

</llo_original>
